<compile_context>
chip_gen: v6e
topology: v6e:2x2x1
jax: 0.10.0
libtpu: 0.0.40
codegen_flags: <defaults>
</compile_context>

<pallas_src>
import math
from functools import partial

import jax
import jax.numpy as jnp
from jax.experimental import pallas as pl
from jax.experimental.pallas import tpu as pltpu


def _round_up(x, m):
    return ((x + m - 1) // m) * m


def _tile(dim, target, align):
    """Largest tile <= target that is a multiple of `align` and divides `dim`;
    falls back to the full dim (a full-extent block is always legal)."""
    if dim <= target:
        return dim
    t = (target // align) * align
    while t >= align:
        if dim % t == 0:
            return t
        t -= align
    return dim


# ----------------------------------------------------------------------------
# Kernel 1: tiled Conv1D (HF GPT-2 linear):  out = x @ W + b
#   grid = (M/tm, N/tn, K/tk); K innermost ("arbitrary"); f32 VMEM accumulator.
#   K is un-tiled (single reduction step) whenever K <= 1024.
# ----------------------------------------------------------------------------
def _linear_kernel(x_ref, w_ref, b_ref, o_ref, acc_ref):
    @pl.when(pl.program_id(2) == 0)
    def _init():
        acc_ref[...] = jnp.zeros_like(acc_ref)

    acc_ref[...] += jnp.dot(x_ref[...], w_ref[...],
                            preferred_element_type=jnp.float32)

    @pl.when(pl.program_id(2) == pl.num_programs(2) - 1)
    def _finalize():
        o_ref[...] = (acc_ref[...] + b_ref[...]).astype(o_ref.dtype)


def conv1d(x2d, w, b, *, tm_target=512, tn_target=512, tk_target=512):
    """x2d: (M, K), w: (K, N), b: (N,) -> (M, N)."""
    M, K = x2d.shape
    N = w.shape[1]
    tm = _tile(M, tm_target, 8)
    tn = _tile(N, tn_target, 128)
    # Full-K contraction when it fits: removes the reduction axis revisits.
    tk = K if K <= 1024 else _tile(K, tk_target, 128)
    b2d = b.reshape(1, N)

    itm = x2d.dtype.itemsize
    cost = pl.CostEstimate(
        flops=2 * M * N * K,
        transcendentals=0,
        # Account for re-streaming: X is read (N/tn) times, W is read (M/tm) times.
        bytes_accessed=int(itm) * ((N // tn) * M * K + (M // tm) * K * N + M * N + N),
    )
    return pl.pallas_call(
        _linear_kernel,
        out_shape=jax.ShapeDtypeStruct((M, N), x2d.dtype),
        grid=(M // tm, N // tn, K // tk),
        in_specs=[
            pl.BlockSpec((tm, tk), lambda i, j, k: (i, k)),
            pl.BlockSpec((tk, tn), lambda i, j, k: (k, j)),
            pl.BlockSpec((1, tn), lambda i, j, k: (0, j)),
        ],
        out_specs=pl.BlockSpec((tm, tn), lambda i, j, k: (i, j)),
        scratch_shapes=[pltpu.VMEM((tm, tn), jnp.float32)],
        compiler_params=pltpu.CompilerParams(
            dimension_semantics=("parallel", "parallel", "arbitrary"),
            vmem_limit_bytes=48 * 1024 * 1024),
        cost_estimate=cost,
    )(x2d, w, b2d)


# ----------------------------------------------------------------------------
# Kernel 2: flash-style causal attention, head-on-grid.
#   arrays: (B*H, T_pad, D); grid = (B*H, T_pad/blk, T_pad/blk), kv innermost.
#   Online softmax with per-block m/l/acc VMEM scratch; causally-masked kv blocks
#   are skipped for compute *and* DMA (index_map clamp); padded key columns are
#   masked with the static true sequence length.
# ----------------------------------------------------------------------------
def _flash_attn_kernel(q_ref, k_ref, v_ref, o_ref, m_sc, l_sc, acc_sc,
                       *, scale, seq_len, blk):
    qi = pl.program_id(1)
    ki = pl.program_id(2)
    nk = pl.num_programs(2)

    @pl.when(ki == 0)
    def _init():
        m_sc[...] = jnp.full_like(m_sc, -jnp.inf)
        l_sc[...] = jnp.zeros_like(l_sc)
        acc_sc[...] = jnp.zeros_like(acc_sc)

    # Blocks fully above the causal diagonal: no compute (and no DMA, because the
    # k/v index_maps clamp ki to qi for those steps, so the block is not re-fetched).
    @pl.when(ki <= qi)
    def _compute():
        q = q_ref[0] * scale          # scale q (blk x D), not s (blk x blk)
        k = k_ref[0]
        v = v_ref[0]

        s = jax.lax.dot_general(q, k, (((1,), (1,)), ((), ())),
                                preferred_element_type=jnp.float32)   # (blk, blk)

        rows = qi * blk + jax.lax.broadcasted_iota(jnp.int32, (blk, blk), 0)
        cols = ki * blk + jax.lax.broadcasted_iota(jnp.int32, (blk, blk), 1)
        s = jnp.where((cols <= rows) & (cols < seq_len), s, -1e30)

        m_prev = m_sc[...]
        m_new = jnp.maximum(m_prev, jnp.max(s, axis=-1, keepdims=True))
        alpha = jnp.exp(m_prev - m_new)
        p = jnp.exp(s - m_new)                                         # (blk, blk)

        # Row-sum on the MXU (p @ ones) instead of an XLU cross-lane reduce.
        l_inc = jnp.dot(p, jnp.ones((blk, 1), jnp.float32),
                        preferred_element_type=jnp.float32)            # (blk, 1)
        pv = jnp.dot(p.astype(v.dtype), v,
                     preferred_element_type=jnp.float32)               # (blk, D)

        l_sc[...] = alpha * l_sc[...] + l_inc
        acc_sc[...] = alpha * acc_sc[...] + pv
        m_sc[...] = m_new

    @pl.when(ki == nk - 1)
    def _finalize():
        l = l_sc[...]
        inv = pl.reciprocal(l, approx=True)
        inv = inv * (2.0 - l * inv)               # one Newton step -> ~f32 exact
        o_ref[0] = (acc_sc[...] * inv).astype(o_ref.dtype)


def flash_attention(q, k, v, *, seq_len, scale, blk):
    """q/k/v: (B*H, T_pad, D), T_pad % blk == 0.  Causal attention over the first
    `seq_len` positions; padded query rows are computed but should be dropped."""
    BH, T_pad, D = q.shape
    nblk = T_pad // blk

    kernel = partial(_flash_attn_kernel, scale=scale, seq_len=seq_len, blk=blk)
    itm = int(q.dtype.itemsize)
    cost = pl.CostEstimate(
        flops=4 * BH * T_pad * T_pad * D,
        transcendentals=BH * T_pad * T_pad,
        bytes_accessed=itm * BH * T_pad * D * (2 + 2 * nblk),
    )

    kv_index = lambda b, qi, ki: (b, jnp.minimum(ki, qi), 0)   # causal DMA clamp
    return pl.pallas_call(
        kernel,
        out_shape=jax.ShapeDtypeStruct((BH, T_pad, D), q.dtype),
        grid=(BH, nblk, nblk),
        in_specs=[
            pl.BlockSpec((1, blk, D), lambda b, qi, ki: (b, qi, 0)),
            pl.BlockSpec((1, blk, D), kv_index),
            pl.BlockSpec((1, blk, D), kv_index),
        ],
        out_specs=pl.BlockSpec((1, blk, D), lambda b, qi, ki: (b, qi, 0)),
        scratch_shapes=[
            pltpu.VMEM((blk, 1), jnp.float32),   # running max  m
            pltpu.VMEM((blk, 1), jnp.float32),   # running sum  l
            pltpu.VMEM((blk, D), jnp.float32),   # running acc
        ],
        compiler_params=pltpu.CompilerParams(
            dimension_semantics=("parallel", "parallel", "arbitrary")),
        cost_estimate=cost,
    )(q, k, v)


# ----------------------------------------------------------------------------
# Full module forward
# ----------------------------------------------------------------------------
def attn_act_gpt2_attention(hidden_states, activation, params, num_heads,
                            *, scale_attn_weights=True, blk_target=128):
    """hidden_states: (B, S, E); activation: (B, E) or None -> (B, S, E)."""
    if activation is not None:
        x = jnp.concatenate([activation[:, None, :], hidden_states], axis=1)
    else:
        x = hidden_states
    B, T, E = x.shape
    H = num_heads
    D = E // H
    scale = (1.0 / math.sqrt(D)) if scale_attn_weights else 1.0

    # Pad the (odd, activation-extended) sequence length to a multiple of the
    # attention block so both kernels always see aligned tiles.
    blk = min(blk_target, _round_up(T, 8))
    T_pad = _round_up(T, blk)
    if T_pad != T:
        x = jnp.pad(x, ((0, 0), (0, T_pad - T), (0, 0)))

    # c_attn: (B*T_pad, E) @ (E, 3E) + b
    qkv = conv1d(x.reshape(B * T_pad, E), params["c_attn_w"], params["c_attn_b"])

    # split_heads for q, k and v in one fused transpose: (B,T,3,H,D) -> (3,B,H,T,D)
    qkv = qkv.reshape(B, T_pad, 3, H, D).transpose(2, 0, 3, 1, 4)
    q = qkv[0].reshape(B * H, T_pad, D)
    k = qkv[1].reshape(B * H, T_pad, D)
    v = qkv[2].reshape(B * H, T_pad, D)

    # Causal attention over all T tokens (activation row included); dropping the
    # activation query row afterwards matches the module's offset causal mask.
    attn = flash_attention(q, k, v, seq_len=T, scale=scale, blk=blk)  # (BH,T_pad,D)

    # merge_heads: (B,H,T,D) -> (B,T,H,D) -> (B*T_pad, E)
    attn = attn.reshape(B, H, T_pad, D).transpose(0, 2, 1, 3).reshape(B * T_pad, E)

    # c_proj over the padded rows (keeps the matmul tiles aligned), then slice.
    out = conv1d(attn, params["c_proj_w"], params["c_proj_b"]).reshape(B, T_pad, E)
    start = 1 if activation is not None else 0
    # TODO(synk): attn_dropout / resid_dropout are identity in eval mode;
    #             layer_past / use_cache (KV cache, `present`) not implemented.
    return out[:, start:T]


# ----------------------------------------------------------------------------
# Pure-JAX reference (module-exact, for the sanity check)
# ----------------------------------------------------------------------------
def reference(hidden_states, activation, params, num_heads):
    if activation is not None:
        x = jnp.concatenate([activation[:, None, :], hidden_states], axis=1)
    else:
        x = hidden_states
    B, T, E = x.shape
    H, D = num_heads, E // num_heads
    qkv = x @ params["c_attn_w"] + params["c_attn_b"]
    q, k, v = jnp.split(qkv, 3, axis=2)
    if activation is not None:
        q = q[:, 1:]
    sh = lambda t: t.reshape(t.shape[0], t.shape[1], H, D).transpose(0, 2, 1, 3)
    q, k, v = sh(q), sh(k), sh(v)
    scores = jnp.einsum("bhqd,bhkd->bhqk", q, k) / math.sqrt(D)
    Sq, Sk = q.shape[2], k.shape[2]
    rows = jnp.arange(Sq)[:, None]
    cols = jnp.arange(Sk)[None, :]
    causal = cols <= rows + (Sk - Sq)
    scores = jnp.where(causal, scores, jnp.finfo(jnp.float32).min)
    probs = jax.nn.softmax(scores, axis=-1)
    o = jnp.einsum("bhqk,bhkd->bhqd", probs, v)
    o = o.transpose(0, 2, 1, 3).reshape(B, Sq, E)
    return o @ params["c_proj_w"] + params["c_proj_b"]


if __name__ == "__main__":
    # small config: batch=2, seq=8, hidden=32, heads=4 (head_dim=8)
    B, S, E, H = 2, 8, 32, 4
    key = jax.random.PRNGKey(0)
    k1, k2, k3, k4, k5, k6 = jax.random.split(key, 6)

    params = {
        "c_attn_w": jax.random.normal(k1, (E, 3 * E), jnp.float32) * 0.02,
        "c_attn_b": jax.random.normal(k2, (3 * E,), jnp.float32) * 0.02,
        "c_proj_w": jax.random.normal(k3, (E, E), jnp.float32) * 0.02,
        "c_proj_b": jax.random.normal(k4, (E,), jnp.float32) * 0.02,
    }
    hidden_states = jax.random.normal(k5, (B, S, E), jnp.float32)
    activation = jax.random.normal(k6, (B, E), jnp.float32)

    # With the prepended activation token (T = S+1 = 9, exercises padding + masking).
    out = attn_act_gpt2_attention(hidden_states, activation, params, H)
    out = jax.block_until_ready(out)
    ref = reference(hidden_states, activation, params, H)
    assert out.shape == (B, S, E)
    assert jnp.allclose(out, ref, atol=1e-4, rtol=1e-4), "mismatch vs reference (activation)"

    # Without an activation token (plain GPT-2 attention path, T = 8 exact tiles).
    out2 = attn_act_gpt2_attention(hidden_states, None, params, H)
    out2 = jax.block_until_ready(out2)
    ref2 = reference(hidden_states, None, params, H)
    assert out2.shape == (B, S, E)
    assert jnp.allclose(out2, ref2, atol=1e-4, rtol=1e-4), "mismatch vs reference (no activation)"

    # Small block size -> multiple kv blocks: exercises the online softmax across
    # blocks, the causal DMA clamp and the pl.when compute skip.
    out3 = attn_act_gpt2_attention(hidden_states, activation, params, H, blk_target=8)
    out3 = jax.block_until_ready(out3)
    assert jnp.allclose(out3, ref, atol=1e-4, rtol=1e-4), "mismatch vs reference (multi kv block)"

    print("KERNEL_OK")
</pallas_src>

<mosaic_0001>
module attributes {stable_mosaic.version = 11 : i64} {
  func.func @_linear_kernel(%arg0: i32, %arg1: i32, %arg2: i32, %arg3: memref<32x32xf32, #tpu.memory_space<vmem>>, %arg4: memref<32x96xf32, #tpu.memory_space<vmem>>, %arg5: memref<1x96xf32, #tpu.memory_space<vmem>>, %arg6: memref<32x96xf32, #tpu.memory_space<vmem>>, %arg7: memref<32x96xf32, #tpu.memory_space<vmem>>) attributes {dimension_semantics = [#tpu.dimension_semantics<parallel>, #tpu.dimension_semantics<parallel>, #tpu.dimension_semantics<arbitrary>], iteration_bounds = array<i64: 1, 1, 1>, scalar_prefetch = 0 : i64, scratch_operands = 1 : i64, tpu.core_type = #tpu.core_type<tc>, window_params = [{transform_indices = @transform_0, window_bounds = array<i64: 32, 32>}, {transform_indices = @transform_1, window_bounds = array<i64: 32, 96>}, {transform_indices = @transform_2, window_bounds = array<i64: 1, 96>}, {transform_indices = @transform_3, window_bounds = array<i64: 32, 96>}]} {
    %c0_i32 = arith.constant 0 : i32
    %0 = arith.cmpi eq, %arg2, %c0_i32 : i32
    %1 = arith.extui %0 : i1 to i32
    %c0_i32_0 = arith.constant 0 : i32
    %2 = arith.cmpi ne, %1, %c0_i32_0 : i32
    scf.if %2 {
      %cst_10 = arith.constant 0.000000e+00 : f32
      %12 = vector.broadcast %cst_10 : f32 to vector<32x96xf32>
      %c0_11 = arith.constant 0 : index
      %c0_12 = arith.constant 0 : index
      %13 = vector.load %arg7[%c0_11, %c0_12] : memref<32x96xf32, #tpu.memory_space<vmem>>, vector<32x96xf32>
      tpu.vector_store %arg7[%c0_11, %c0_12], %12 {strides = array<i32>} : memref<32x96xf32, #tpu.memory_space<vmem>>, vector<32x96xf32>,
    } else {
    }
    %c0 = arith.constant 0 : index
    %c0_1 = arith.constant 0 : index
    %3 = vector.load %arg7[%c0, %c0_1] : memref<32x96xf32, #tpu.memory_space<vmem>>, vector<32x96xf32>
    %c0_2 = arith.constant 0 : index
    %c0_3 = arith.constant 0 : index
    %4 = vector.load %arg3[%c0_2, %c0_3] : memref<32x32xf32, #tpu.memory_space<vmem>>, vector<32x32xf32>
    %c0_4 = arith.constant 0 : index
    %c0_5 = arith.constant 0 : index
    %5 = vector.load %arg4[%c0_4, %c0_5] : memref<32x96xf32, #tpu.memory_space<vmem>>, vector<32x96xf32>
    %cst = arith.constant dense<0.000000e+00> : vector<32x96xf32>
    %6 = tpu.matmul %4, %5, %cst {dimension_numbers = #tpu.dot_dimension_numbers<[1], [0], [0], [1], [0, 0, 1, 1], [], []>} : vector<32x32xf32>, vector<32x96xf32>, vector<32x96xf32> -> vector<32x96xf32>
    %7 = arith.addf %3, %6 : vector<32x96xf32>
    %c0_6 = arith.constant 0 : index
    %c0_7 = arith.constant 0 : index
    %8 = vector.load %arg7[%c0_6, %c0_7] : memref<32x96xf32, #tpu.memory_space<vmem>>, vector<32x96xf32>
    tpu.vector_store %arg7[%c0_6, %c0_7], %7 {strides = array<i32>} : memref<32x96xf32, #tpu.memory_space<vmem>>, vector<32x96xf32>,
    %c0_i32_8 = arith.constant 0 : i32
    %9 = arith.cmpi eq, %arg2, %c0_i32_8 : i32
    %10 = arith.extui %9 : i1 to i32
    %c0_i32_9 = arith.constant 0 : i32
    %11 = arith.cmpi ne, %10, %c0_i32_9 : i32
    scf.if %11 {
      %c0_10 = arith.constant 0 : index
      %c0_11 = arith.constant 0 : index
      %12 = vector.load %arg7[%c0_10, %c0_11] : memref<32x96xf32, #tpu.memory_space<vmem>>, vector<32x96xf32>
      %c0_12 = arith.constant 0 : index
      %c0_13 = arith.constant 0 : index
      %13 = vector.load %arg5[%c0_12, %c0_13] : memref<1x96xf32, #tpu.memory_space<vmem>>, vector<1x96xf32>
      %14 = vector.broadcast %13 : vector<1x96xf32> to vector<32x96xf32>
      %15 = arith.addf %12, %14 : vector<32x96xf32>
      %c0_14 = arith.constant 0 : index
      %c0_15 = arith.constant 0 : index
      %16 = vector.load %arg6[%c0_14, %c0_15] : memref<32x96xf32, #tpu.memory_space<vmem>>, vector<32x96xf32>
      tpu.vector_store %arg6[%c0_14, %c0_15], %15 {strides = array<i32>} : memref<32x96xf32, #tpu.memory_space<vmem>>, vector<32x96xf32>,
    } else {
    }
    return
  }
  func.func @transform_0(%arg0: i32, %arg1: i32, %arg2: i32) -> (i32, i32) {
    %c0_i32 = arith.constant 0 : i32
    return %arg0, %arg2 : i32, i32
  }
  func.func @transform_1(%arg0: i32, %arg1: i32, %arg2: i32) -> (i32, i32) {
    %c0_i32 = arith.constant 0 : i32
    return %arg2, %arg1 : i32, i32
  }
  func.func @transform_2(%arg0: i32, %arg1: i32, %arg2: i32) -> (i32, i32) {
    %c0_i32 = arith.constant 0 : i32
    %c0_i32_0 = arith.constant 0 : i32
    return %c0_i32, %arg1 : i32, i32
  }
  func.func @transform_3(%arg0: i32, %arg1: i32, %arg2: i32) -> (i32, i32) {
    %c0_i32 = arith.constant 0 : i32
    return %arg0, %arg1 : i32, i32
  }
}

</mosaic_0001>

<llo_original>
// kernel: tpu_custom_call.1
$region0: #{tpu_custom_call.1}
  #allocation0 [shape = 'u32[]', space=smem, size = 0x4, offset = 0x4, fixed_abs, tag = 'smem constant byte address 0x4 - core index']
  #allocation1 [shape = 'u32[144,128]{1,0:T(1,128)}', space=vmem, size = 0x12000, scoped, tag = 'internal scratch']
  #allocation2 [shape = 'f32[32,96]{1,0:T(8,128)}', space=vmem, size = 0x4000, scoped, tag = 'scratch operand']
  %s0 = inlined_call_operand.hbm [shape: f32[32,32], index: 0, kind: input, shape index: {}]
  %s1 = inlined_call_operand.hbm [shape: f32[32,96], index: 1, kind: input, shape index: {}]
  %s2 = inlined_call_operand.vmem [shape: f32[1,96], index: 2, kind: input, shape index: {}]
  %s3 = inlined_call_operand.hbm [shape: f32[32,96], index: 3, kind: output, shape index: {}]
  %s4 = sld [smem:[#allocation0]]
  $region38: #{tpu_custom_call.1} parent=0
    _
  %s6 = ssub.s32 1, %s4
  %s7 = scalar_select 0, %s6, %s4
  $region1: #{tpu_custom_call.1} parent=0
    #allocation3 [shape = 'u8[16384]{0}', space=vmem, size = 0x4000, scoped, tag = 'input window, operand 0, single buffered']
    #allocation4 [shape = 's32[1]{0}', space=sflag, size = 0x4, scoped, tag = 'scoped memory for tpu_custom_call.1']
    #allocation5 [shape = 's32[1]{0}', space=sflag, size = 0x4, scoped, tag = 'scoped memory for tpu_custom_call.1']
    #allocation6 [shape = 'u8[16384]{0}', space=vmem, size = 0x4000, scoped, tag = 'input window, operand 1, single buffered']
    #allocation7 [shape = 's32[1]{0}', space=sflag, size = 0x4, scoped, tag = 'scoped memory for tpu_custom_call.1']
    #allocation8 [shape = 'u8[16384]{0}', space=vmem, size = 0x4000, scoped, tag = 'output window, operand 0, single buffered']
    %8 = vsyncpa [#allocation4], 0
    %9 = vsyncpa [#allocation7], 0
    %10 = vsyncpa [#allocation5], 0
    // Predicated region
    $region2: #{tpu_custom_call.1} parent=1 // pred_check
      _
    $region3: #{tpu_custom_call.1} parent=1 // pred_check_branch
      %12 = sbr.rel (0) target = $region5
    $region4: #{tpu_custom_call.1} parent=1 // pred_region
      %s14 = ssub.s32 512, 512
      %15 = vsyncadd [#allocation4], %s14
      %s16 = sshll.u32 [#allocation3], 4
      %s17 = int_to_ptr.vmem [resolvable:$true] %s16
      %22 = dma.hbm_to_vmem [thread:$0]  %s0, 512, %s17, [#allocation4], 128, 128, 8
    $region5: #{tpu_custom_call.1} parent=1 // pred_fallthru
      _
    // Predicated region
    $region6: #{tpu_custom_call.1} parent=1 // pred_check
      _
    $region7: #{tpu_custom_call.1} parent=1 // pred_check_branch
      %24 = sbr.rel (0) target = $region9
    $region8: #{tpu_custom_call.1} parent=1 // pred_region
      %s26 = ssub.s32 512, 512
      %27 = vsyncadd [#allocation7], %s26
      %s28 = sshll.u32 [#allocation6], 4
      %s29 = int_to_ptr.vmem [resolvable:$true] %s28
      %34 = dma.hbm_to_vmem [thread:$0]  %s1, 512, %s29, [#allocation7], 128, 128, 8
    $region9: #{tpu_custom_call.1} parent=1 // pred_fallthru
      _
    // Predicated region
    $region10: #{tpu_custom_call.1} parent=1 // pred_check
      _
    $region11: #{tpu_custom_call.1} parent=1 // pred_check_branch
      %36 = sbr.rel (0) target = $region13
    $region12: #{tpu_custom_call.1} parent=1 // pred_region
      _
    $region13: #{tpu_custom_call.1} parent=1 // pred_fallthru
      _
    // Predicated region
    $region14: #{tpu_custom_call.1} parent=1 // pred_check
      _
    $region15: #{tpu_custom_call.1} parent=1 // pred_check_branch
      %38 = sbr.rel (0) target = $region17
    $region16: #{tpu_custom_call.1} parent=1 // pred_region
      %39 = dma.done [#allocation4], 512
    $region17: #{tpu_custom_call.1} parent=1 // pred_fallthru
      _
    // Predicated region
    $region18: #{tpu_custom_call.1} parent=1 // pred_check
      _
    $region19: #{tpu_custom_call.1} parent=1 // pred_check_branch
      %41 = sbr.rel (0) target = $region21
    $region20: #{tpu_custom_call.1} parent=1 // pred_region
      %42 = dma.done [#allocation7], 512
    $region21: #{tpu_custom_call.1} parent=1 // pred_fallthru
      _
    %p43 = scmp.eq.s32.totalorder 0, 0
    // Predicated region
    $region22: #{tpu_custom_call.1} parent=1 // pred_check
      %p44 = pneg %p43
    $region23: #{tpu_custom_call.1} parent=1 // pred_check_branch
      %46 = sbr.rel (%p44) target = $region25
    $region24: #{tpu_custom_call.1} parent=1 // pred_region
      %vm47 = vcmask 785408
      %48 = vst.msk [vmem:[#allocation2] sm:$0xff] %vm47, 0.0
      %49 = vst.msk [vmem:[#allocation2 + $0x8] sm:$0xff] %vm47, 0.0
      %50 = vst.msk [vmem:[#allocation2 + $0x10] sm:$0xff] %vm47, 0.0
      %51 = vst.msk [vmem:[#allocation2 + $0x18] sm:$0xff] %vm47, 0.0
    $region25: #{tpu_custom_call.1} parent=1 // pred_fallthru
      _
    %v52 = vld [vmem:[#allocation2] sm:$0xff]
    %v53 = vld [vmem:[#allocation2 + $0x8] sm:$0xff]
    %v54 = vld [vmem:[#allocation2 + $0x10] sm:$0xff]
    %v55 = vld [vmem:[#allocation2 + $0x18] sm:$0xff]
    %v56 = vld [vmem:[#allocation3] sm:$0xff]
    %v57 = vld [vmem:[#allocation3 + $0x8] sm:$0xff]
    %v58 = vld [vmem:[#allocation3 + $0x10] sm:$0xff]
    %v59 = vld [vmem:[#allocation3 + $0x18] sm:$0xff]
    %v60 = vld [vmem:[#allocation6] sm:$0xff]
    %v61 = vld [vmem:[#allocation6 + $0x8] sm:$0xff]
    %v62 = vld [vmem:[#allocation6 + $0x10] sm:$0xff]
    %v63 = vld [vmem:[#allocation6 + $0x18] sm:$0xff]
    %vm64 = vcmask 261120
    %v66 = vsel %vm64, %v56, 0
    %v69 = vsel %vm64, %v57, 0
    %v72 = vsel %vm64, %v58, 0
    %v75 = vsel %vm64, %v59, 0
    %77 = vmatprep.subr.mxu0 0.0
    %78 = vmatpush1.msra.mxu0 0.0
    %79 = vmatprep.subr.mxu0 0.0
    %80 = vmatpush1.msra.mxu0 0.0
    %81 = vmatprep.subr.mxu0 0.0
    %82 = vmatpush1.msra.mxu0 0.0
    %83 = vmatprep.subr.mxu0 0.0
    %84 = vmatpush1.msra.mxu0 0.0
    %85 = vmatprep.subr.mxu0 0.0
    %86 = vmatpush1.msra.mxu0 0.0
    %87 = vmatprep.subr.mxu0 0.0
    %88 = vmatpush1.msra.mxu0 0.0
    %89 = vmatprep.subr.mxu0 0.0
    %90 = vmatpush1.msra.mxu0 0.0
    %91 = vmatprep.subr.mxu0 0.0
    %92 = vmatpush1.msra.mxu0 0.0
    %93 = vmatprep.subr.mxu0 0.0
    %94 = vmatpush1.msra.mxu0 0.0
    %95 = vmatprep.subr.mxu0 0.0
    %96 = vmatpush1.msra.mxu0 0.0
    %97 = vmatprep.subr.mxu0 0.0
    %98 = vmatpush1.msra.mxu0 0.0
    %99 = vmatprep.subr.mxu0 0.0
    %100 = vmatpush1.msra.mxu0 0.0
    %101 = vmatprep.subr.mxu0 0.0
    %102 = vmatpush1.msra.mxu0 %v63
    %103 = vmatprep.subr.mxu0 0.0
    %104 = vmatpush1.msra.mxu0 %v62
    %105 = vmatprep.subr.mxu0 0.0
    %106 = vmatpush1.msra.mxu0 %v61
    %107 = vmatprep.subr.mxu0 0.0
    %108 = vmatpush1.msra.mxu0 %v60
    %109 = vmatprep.subr.mxu0 0.0
    %110 = vmatpush2.msra.mxu0 0.0
    %111 = vmatprep.subr.mxu0 0.0
    %112 = vmatpush2.msra.mxu0 0.0
    %113 = vmatprep.subr.mxu0 0.0
    %114 = vmatpush2.msra.mxu0 0.0
    %115 = vmatprep.subr.mxu0 0.0
    %116 = vmatpush2.msra.mxu0 0.0
    %117 = vmatprep.subr.mxu0 0.0
    %118 = vmatpush2.msra.mxu0 0.0
    %119 = vmatprep.subr.mxu0 0.0
    %120 = vmatpush2.msra.mxu0 0.0
    %121 = vmatprep.subr.mxu0 0.0
    %122 = vmatpush2.msra.mxu0 0.0
    %123 = vmatprep.subr.mxu0 0.0
    %124 = vmatpush2.msra.mxu0 0.0
    %125 = vmatprep.subr.mxu0 0.0
    %126 = vmatpush2.msra.mxu0 0.0
    %127 = vmatprep.subr.mxu0 0.0
    %128 = vmatpush2.msra.mxu0 0.0
    %129 = vmatprep.subr.mxu0 0.0
    %130 = vmatpush2.msra.mxu0 0.0
    %131 = vmatprep.subr.mxu0 0.0
    %132 = vmatpush2.msra.mxu0 0.0
    %133 = vmatprep.subr.mxu0 0.0
    %134 = vmatpush2.msra.mxu0 0.0
    %135 = vmatprep.subr.mxu0 0.0
    %136 = vmatpush2.msra.mxu0 0.0
    %137 = vmatprep.subr.mxu0 0.0
    %138 = vmatpush2.msra.mxu0 0.0
    %139 = vmatprep.subr.mxu0 0.0
    %140 = vmatpush2.msra.mxu0 0.0
    %141 = vmatprep.mubr.f32.mxu0 0.0
    %142 = vmatmul.mubr.f32.gmra.mxu0 %v66
    %v143 = vpop.f32.mrf.mxu0
    %v144 = vadd.f32 0.0, %v143
    %v145 = vpop.f32.mrf.mxu0
    %146 = vmatprep.mubr.f32.mxu0 0.0
    %147 = vmatmul.mubr.f32.gmra.mxu0 %v69
    %v148 = vpop.f32.mrf.mxu0
    %v149 = vadd.f32 0.0, %v148
    %v150 = vpop.f32.mrf.mxu0
    %151 = vmatprep.mubr.f32.mxu0 0.0
    %152 = vmatmul.mubr.f32.gmra.mxu0 %v72
    %v153 = vpop.f32.mrf.mxu0
    %v154 = vadd.f32 0.0, %v153
    %v155 = vpop.f32.mrf.mxu0
    %156 = vmatprep.mubr.f32.mxu0 0.0
    %157 = vmatmul.mubr.f32.gmra.mxu0 %v75
    %v158 = vpop.f32.mrf.mxu0
    %v159 = vadd.f32 0.0, %v158
    %v160 = vpop.f32.mrf.mxu0
    %161 = vdwg.mxu0
    %v162 = vadd.f32 %v52, %v144
    %v163 = vadd.f32 %v53, %v149
    %v164 = vadd.f32 %v54, %v154
    %v165 = vadd.f32 %v55, %v159
    %vm166 = vcmask 785408
    %167 = vst.msk [vmem:[#allocation2] sm:$0xff] %vm166, %v162
    %168 = vst.msk [vmem:[#allocation2 + $0x8] sm:$0xff] %vm166, %v163
    %169 = vst.msk [vmem:[#allocation2 + $0x10] sm:$0xff] %vm166, %v164
    %170 = vst.msk [vmem:[#allocation2 + $0x18] sm:$0xff] %vm166, %v165
    // Predicated region
    $region26: #{tpu_custom_call.1} parent=1 // pred_check
      %p171 = pneg %p43
    $region27: #{tpu_custom_call.1} parent=1 // pred_check_branch
      %173 = sbr.rel (%p171) target = $region29
    $region28: #{tpu_custom_call.1} parent=1 // pred_region
      %v174 = vld [vmem:[#allocation2] sm:$0xff]
      %v175 = vld [vmem:[#allocation2 + $0x8] sm:$0xff]
      %v176 = vld [vmem:[#allocation2 + $0x10] sm:$0xff]
      %v177 = vld [vmem:[#allocation2 + $0x18] sm:$0xff]
      %v178 = vld [vmem:[%s2] sm:$0x1]
      %v180 = vlaneseq
      %v181 = vshrl.u32 %v180, 7
      %v182 = vsub.s32 0, %v181
      %v183 = vrot.slane %v178, %v182
      %v185 = vadd.f32 %v174, %v183
      %v186 = vadd.f32 %v175, %v183
      %v187 = vadd.f32 %v176, %v183
      %v188 = vadd.f32 %v177, %v183
      %189 = vst.msk [vmem:[#allocation8] sm:$0xff] %vm166, %v185
      %190 = vst.msk [vmem:[#allocation8 + $0x8] sm:$0xff] %vm166, %v186
      %191 = vst.msk [vmem:[#allocation8 + $0x10] sm:$0xff] %vm166, %v187
      %192 = vst.msk [vmem:[#allocation8 + $0x18] sm:$0xff] %vm166, %v188
    $region29: #{tpu_custom_call.1} parent=1 // pred_fallthru
      _
    // Predicated region
    $region30: #{tpu_custom_call.1} parent=1 // pred_check
      _
    $region31: #{tpu_custom_call.1} parent=1 // pred_check_branch
      %194 = sbr.rel (0) target = $region33
    $region32: #{tpu_custom_call.1} parent=1 // pred_region
      %s196 = ssub.s32 512, 512
      %197 = vsyncadd [#allocation5], %s196
      %s198 = sshll.u32 [#allocation8], 4
      %s199 = int_to_ptr.vmem [resolvable:$true] %s198
      %204 = dma.vmem_to_hbm [thread:$0]  %s199, 512, %s3, [#allocation5], 128, 128, 8
    $region33: #{tpu_custom_call.1} parent=1 // pred_fallthru
      _
    // Predicated region
    $region34: #{tpu_custom_call.1} parent=1 // pred_check
      _
    $region35: #{tpu_custom_call.1} parent=1 // pred_check_branch
      %206 = sbr.rel (0) target = $region37
    $region36: #{tpu_custom_call.1} parent=1 // pred_region
      %207 = dma.done [#allocation5], 512
    $region37: #{tpu_custom_call.1} parent=1 // pred_fallthru
      _
    %208 = vsyncpa [#allocation4], 1
    %209 = vsyncpa [#allocation7], 1
    %210 = vsyncpa [#allocation5], 1

</llo_original>
